<compile_context>
chip_gen: v7x
topology: tpu7x:2x2x1
jax: 0.10.0
libtpu: 0.0.40
codegen_flags: <defaults>
</compile_context>

<pallas_src>
import functools

import jax
import jax.numpy as jnp
from jax import lax
from jax.experimental import pallas as pl
from jax.experimental.pallas import tpu as pltpu


def _focal_loss_kernel(*refs, gamma, n_rows, steps_per_partial, has_aw):
    if has_aw:
        logits_ref, targets_ref, aw_ref, out_ref = refs
    else:
        logits_ref, targets_ref, out_ref = refs
        aw_ref = None

    p = pl.program_id(0)          # partial-sum index ("parallel", 2 TCs on v7x)
    s = pl.program_id(1)          # batch-block index ("arbitrary" reduction)

    @pl.when(s == 0)
    def _init():
        out_ref[...] = jnp.zeros_like(out_ref)

    x = logits_ref[...].astype(jnp.float32)          # (TILE_N, C), f32 compute
    tgt = targets_ref[...]                           # (TILE_N, 1) int32
    tn, c = x.shape

    # Numerically-stable log-softmax gathered at the target class.
    m = jnp.max(x, axis=1, keepdims=True)                       # (TILE_N, 1)
    e = jnp.exp(x - m)
    log_sum_e = jnp.log(jnp.sum(e, axis=1, keepdims=True))      # (TILE_N, 1)

    # Target-logit gather without a float one-hot (select instead of mask*mul).
    cls_ids = lax.broadcasted_iota(jnp.int32, (tn, c), 1)
    x_t = jnp.sum(jnp.where(cls_ids == tgt, x, 0.0), axis=1, keepdims=True)

    log_p = (x_t - m) - log_sum_e          # log softmax at target (<= 0)
    probs = jnp.exp(log_p)
    one_minus_p = jnp.maximum(1.0 - probs, 0.0)

    g = float(gamma)
    if g == 0.0:
        focal = jnp.ones_like(one_minus_p)
    elif g.is_integer() and 1.0 <= g <= 8.0:
        # integer gamma (common gamma=2): plain VPU multiplies, no EUP round-trip
        focal = one_minus_p
        for _ in range(int(g) - 1):
            focal = focal * one_minus_p
    else:
        # general (non-integer) gamma: explicit, clamped exp/log lowering
        focal = jnp.exp(g * jnp.log(jnp.maximum(one_minus_p, 1e-30)))

    batch_loss = -(focal * log_p)                                # (TILE_N, 1)
    if has_aw:
        batch_loss = batch_loss * aw_ref[...]     # alpha[target] * weight, f32

    # Mask rows past the true batch size (partially/fully OOB tiles).  Garbage
    # rows never reach the accumulator: jnp.where is a select, so NaN/Inf in
    # the padded rows cannot propagate.
    row0 = (p * steps_per_partial + s) * tn
    row = row0 + lax.broadcasted_iota(jnp.int32, (tn, 1), 0)
    valid = row < n_rows

    # Elementwise accumulation into the resident output block: no per-step
    # cross-sublane reduce, no loop-carried scalar.
    out_ref[...] += jnp.where(valid, batch_loss, 0.0).reshape(1, tn, 1)


def _round_up(x, m):
    return ((x + m - 1) // m) * m


def _vmem_limit_bytes():
    # Physical VMEM per TensorCore: 128 MiB on v5e/v6e, 64 MiB on v7x.  Use up
    # to 3/4 of it (headroom for compiler-internal scratch), capped at 64 MiB
    # (comfortably past the HBM-roofline plateau on every generation).
    phys = 64 * 1024 * 1024
    try:
        info = pltpu.get_tpu_info()
        phys = int(getattr(info, "vmem_capacity_bytes", phys))
    except Exception:
        pass
    return int(min((phys * 3) // 4, 64 * 1024 * 1024))


def _choose_tile_n(n, c, itemsize, has_aw, budget_bytes, max_rows=None):
    """Rows per block, from a VMEM model counting lane padding, double buffers,
    the lane-padded (TILE_N, 1) sidecar/output columns and the live f32
    in-kernel intermediates."""
    c_pad = _round_up(c, 128)                 # lane padding of the logits tile
    col = 2 * 128 * 4                         # one double-buffered (TILE_N,1) block
    n_cols = 2 + (1 if has_aw else 0)         # targets + output (+ alpha*weights)
    per_row = (2 * c_pad * itemsize           # double-buffered logits tile
               + n_cols * col                 # lane-padded column blocks
               + 4 * c_pad * 4)               # f32 intermediates (x, e, select, ...)
    align = 8 if itemsize >= 4 else 16        # sublane packing (f32 vs bf16/f16)
    budget_bytes = max(int(budget_bytes), per_row * align)
    tile = (budget_bytes // per_row) // align * align
    tile = min(tile, _round_up(n, align))     # bytes cap only, no arbitrary row cap
    if max_rows is not None:
        tile = min(tile, max(align, (int(max_rows) // align) * align))
    return int(max(tile, align))


def focal_loss(logits, targets, alpha=None, *, gamma=2.0, size_average=True,
               weights=None, max_rows_per_block=None):
    """Pallas implementation of FocalLoss.forward.

    logits:  (N, C) float (any float dtype; cast to f32 inside the kernel)
    targets: (N,)   int
    alpha:   (C, 1) / (C,) float per-class alpha, or None for ones
    weights: optional (N,) float per-sample weights
    max_rows_per_block: test knob to force small tiles / multi-block grids
    """
    n, c = logits.shape
    targets_flat = targets.reshape(-1).astype(jnp.int32)
    targets2d = targets_flat.reshape(n, 1)

    # Per-sample alpha gathered in the wrapper; fused with the optional
    # per-sample weights into a single (N, 1) sidecar.
    alpha_n = None
    if alpha is not None:
        alpha_flat = jnp.asarray(alpha, jnp.float32).reshape(-1)
        alpha_n = alpha_flat[targets_flat].reshape(n, 1)

    if weights is not None:
        w = weights.reshape(n, 1).astype(jnp.float32)
        aw = alpha_n * w if alpha_n is not None else w
    else:
        aw = alpha_n
    has_aw = aw is not None        # no fake all-ones sidecar is ever DMA'd

    itemsize = jnp.dtype(logits.dtype).itemsize
    vmem_limit = _vmem_limit_bytes()
    tile_n = _choose_tile_n(n, c, itemsize, has_aw,
                            budget_bytes=vmem_limit - (4 << 20),
                            max_rows=max_rows_per_block)

    num_blocks = -(-n // tile_n)
    num_partials = 2 if num_blocks >= 2 else 1    # one partial per TC on v7x
    spp = -(-num_blocks // num_partials)          # grid steps per partial

    def _row_block(p, s):
        b = p * spp + s
        if num_partials * spp != num_blocks:      # odd block count: clamp the
            b = jnp.minimum(b, num_blocks - 1)    # overhanging (fully masked) tile
        return b

    in_specs = [
        pl.BlockSpec((tile_n, c), lambda p, s: (_row_block(p, s), 0)),   # logits
        pl.BlockSpec((tile_n, 1), lambda p, s: (_row_block(p, s), 0)),   # targets
    ]
    args = [logits, targets2d]
    if has_aw:
        in_specs.append(
            pl.BlockSpec((tile_n, 1), lambda p, s: (_row_block(p, s), 0)))
        args.append(aw)

    kernel = functools.partial(
        _focal_loss_kernel,
        gamma=float(gamma),
        n_rows=int(n),
        steps_per_partial=int(spp),
        has_aw=has_aw,
    )

    partials = pl.pallas_call(
        kernel,
        out_shape=jax.ShapeDtypeStruct((num_partials, tile_n, 1), jnp.float32),
        grid=(num_partials, spp),
        in_specs=in_specs,
        out_specs=pl.BlockSpec((1, tile_n, 1), lambda p, s: (p, 0, 0)),
        compiler_params=pltpu.CompilerParams(
            dimension_semantics=("parallel", "arbitrary"),
            vmem_limit_bytes=int(vmem_limit),
        ),
    )(*args)

    total = jnp.sum(partials)
    if size_average:
        alpha_sum = jnp.sum(alpha_n) if alpha_n is not None else jnp.float32(n)
        total = total / alpha_sum
    return total


def _focal_loss_ref(logits, targets, alpha=None, *, gamma=2.0,
                    size_average=True, weights=None):
    """Pure-JAX reference mirroring the torch forward."""
    n, c = logits.shape
    x = logits.astype(jnp.float32)
    if alpha is None:
        alpha = jnp.ones((c, 1), jnp.float32)
    p = jax.nn.softmax(x, axis=-1)
    mask = jax.nn.one_hot(targets, c, dtype=jnp.float32)
    alpha_n = jnp.asarray(alpha, jnp.float32).reshape(-1)[targets].reshape(n, 1)
    probs = jnp.sum(p * mask, axis=1, keepdims=True)
    log_p = jnp.log(probs)
    batch_loss = -alpha_n * jnp.power(1.0 - probs, gamma) * log_p
    if weights is not None:
        batch_loss = batch_loss * weights.reshape(n, 1).astype(jnp.float32)
    total = jnp.sum(batch_loss)
    if size_average:
        total = total / jnp.sum(alpha_n)
    return total


if __name__ == "__main__":
    key = jax.random.PRNGKey(0)

    # --- case 1: f32 logits, explicit (all-ones) alpha, per-sample weights,
    #             size_average=True ------------------------------------------
    N, C = 8, 16
    k1, k2, k3 = jax.random.split(key, 3)
    logits = jax.random.normal(k1, (N, C), dtype=jnp.float32)
    targets = jax.random.randint(k2, (N,), 0, C, dtype=jnp.int32)
    alpha = jnp.ones((C, 1), dtype=jnp.float32)
    weights = jax.random.uniform(k3, (N,), dtype=jnp.float32) + 0.5

    loss = jax.block_until_ready(
        focal_loss(logits, targets, alpha, gamma=2.0, size_average=True,
                   weights=weights))
    ref = _focal_loss_ref(logits, targets, alpha, gamma=2.0, size_average=True,
                          weights=weights)
    assert jnp.allclose(loss, ref, rtol=1e-5, atol=1e-6), (loss, ref)

    # --- case 2: bf16 logits (native dtype in, f32 compute), no alpha/weights,
    #             N not a multiple of the sublane packing, sum reduction ------
    N2, C2 = 13, 16
    k4, k5 = jax.random.split(k3)
    logits2 = jax.random.normal(k4, (N2, C2), dtype=jnp.float32).astype(jnp.bfloat16)
    targets2 = jax.random.randint(k5, (N2,), 0, C2, dtype=jnp.int32)

    loss2 = jax.block_until_ready(
        focal_loss(logits2, targets2, None, gamma=2.0, size_average=False))
    ref2 = _focal_loss_ref(logits2, targets2, None, gamma=2.0, size_average=False)
    assert jnp.allclose(loss2, ref2, rtol=1e-4, atol=1e-5), (loss2, ref2)

    # --- case 3: non-trivial per-class alpha, gamma=3, odd N and C -----------
    N3, C3 = 37, 21
    k6, k7, k8 = jax.random.split(k5, 3)
    logits3 = jax.random.normal(k6, (N3, C3), dtype=jnp.float32)
    targets3 = jax.random.randint(k7, (N3,), 0, C3, dtype=jnp.int32)
    alpha3 = jax.random.uniform(k8, (C3,), dtype=jnp.float32) + 0.25

    loss3 = jax.block_until_ready(
        focal_loss(logits3, targets3, alpha3, gamma=3.0, size_average=True))
    ref3 = _focal_loss_ref(logits3, targets3, alpha3, gamma=3.0, size_average=True)
    assert jnp.allclose(loss3, ref3, rtol=1e-5, atol=1e-5), (loss3, ref3)

    # --- case 4: forced small tiles -> multi-block grid with an odd block
    #             count (exercises the 2-partial split + clamped overhang) ----
    N4, C4 = 300, 16
    k9, k10, k11 = jax.random.split(k8, 3)
    logits4 = jax.random.normal(k9, (N4, C4), dtype=jnp.float32)
    targets4 = jax.random.randint(k10, (N4,), 0, C4, dtype=jnp.int32)
    weights4 = jax.random.uniform(k11, (N4,), dtype=jnp.float32) + 0.5

    loss4 = jax.block_until_ready(
        focal_loss(logits4, targets4, None, gamma=2.0, size_average=True,
                   weights=weights4, max_rows_per_block=64))
    ref4 = _focal_loss_ref(logits4, targets4, None, gamma=2.0, size_average=True,
                           weights=weights4)
    assert jnp.allclose(loss4, ref4, rtol=1e-5, atol=1e-5), (loss4, ref4)

    print("KERNEL_OK")
</pallas_src>

<mosaic_0001>
module attributes {stable_mosaic.version = 11 : i64} {
  func.func @_focal_loss_kernel(%arg0: i32, %arg1: i32, %arg2: memref<8x16xf32, #tpu.memory_space<vmem>>, %arg3: memref<8x1xi32, #tpu.memory_space<vmem>>, %arg4: memref<8x1xf32, #tpu.memory_space<vmem>>, %arg5: memref<1x8x1xf32, #tpu.memory_space<vmem>>) attributes {dimension_semantics = [#tpu.dimension_semantics<parallel>, #tpu.dimension_semantics<arbitrary>], iteration_bounds = array<i64: 1, 1>, scalar_prefetch = 0 : i64, scratch_operands = 0 : i64, tpu.core_type = #tpu.core_type<tc>, window_params = [{transform_indices = @transform_0, window_bounds = array<i64: 8, 16>}, {transform_indices = @transform_1, window_bounds = array<i64: 8, 1>}, {transform_indices = @transform_2, window_bounds = array<i64: 8, 1>}, {transform_indices = @transform_3, window_bounds = array<i64: 1, 8, 1>}]} {
    %c0_i32 = arith.constant 0 : i32
    %0 = arith.cmpi eq, %arg1, %c0_i32 : i32
    %1 = arith.extui %0 : i1 to i32
    %c0_i32_0 = arith.constant 0 : i32
    %2 = arith.cmpi ne, %1, %c0_i32_0 : i32
    scf.if %2 {
      %cst_20 = arith.constant 0.000000e+00 : f32
      %47 = vector.broadcast %cst_20 : f32 to vector<1x8x1xf32>
      %c0_21 = arith.constant 0 : index
      %c0_22 = arith.constant 0 : index
      %c0_23 = arith.constant 0 : index
      %48 = vector.load %arg5[%c0_21, %c0_22, %c0_23] : memref<1x8x1xf32, #tpu.memory_space<vmem>>, vector<1x8x1xf32>
      tpu.vector_store %arg5[%c0_21, %c0_22, %c0_23], %47 {strides = array<i32>} : memref<1x8x1xf32, #tpu.memory_space<vmem>>, vector<1x8x1xf32>,
    } else {
    }
    %c0 = arith.constant 0 : index
    %c0_1 = arith.constant 0 : index
    %3 = vector.load %arg2[%c0, %c0_1] : memref<8x16xf32, #tpu.memory_space<vmem>>, vector<8x16xf32>
    %c0_2 = arith.constant 0 : index
    %c0_3 = arith.constant 0 : index
    %4 = vector.load %arg3[%c0_2, %c0_3] : memref<8x1xi32, #tpu.memory_space<vmem>>, vector<8x1xi32>
    %cst = arith.constant dense<0xFF800000> : vector<8xf32>
    %5 = vector.multi_reduction <maximumf>, %3, %cst [1] : vector<8x16xf32> to vector<8xf32>
    %6 = vector.shape_cast %5 : vector<8xf32> to vector<8x1xf32>
    %7 = vector.broadcast %6 : vector<8x1xf32> to vector<8x16xf32>
    %8 = arith.subf %3, %7 : vector<8x16xf32>
    %9 = math.exp %8 : vector<8x16xf32>
    %cst_4 = arith.constant dense<0.000000e+00> : vector<8xf32>
    %10 = vector.multi_reduction <add>, %9, %cst_4 [1] : vector<8x16xf32> to vector<8xf32>
    %11 = vector.shape_cast %10 : vector<8xf32> to vector<8x1xf32>
    %12 = math.log %11 : vector<8x1xf32>
    %13 = tpu.iota {dimensions = array<i32: 1>} : vector<8x16xi32>
    %14 = vector.broadcast %4 : vector<8x1xi32> to vector<8x16xi32>
    %15 = arith.cmpi eq, %13, %14 : vector<8x16xi32>
    %cst_5 = arith.constant 0.000000e+00 : f32
    %16 = vector.broadcast %cst_5 : f32 to vector<8x16xf32>
    %17 = arith.select %15, %3, %16 : vector<8x16xi1>, vector<8x16xf32>
    %cst_6 = arith.constant dense<0.000000e+00> : vector<8xf32>
    %18 = vector.multi_reduction <add>, %17, %cst_6 [1] : vector<8x16xf32> to vector<8xf32>
    %19 = vector.shape_cast %18 : vector<8xf32> to vector<8x1xf32>
    %20 = arith.subf %19, %6 : vector<8x1xf32>
    %21 = arith.subf %20, %12 : vector<8x1xf32>
    %22 = math.exp %21 : vector<8x1xf32>
    %cst_7 = arith.constant 1.000000e+00 : f32
    %23 = vector.broadcast %cst_7 : f32 to vector<8x1xf32>
    %24 = arith.subf %23, %22 : vector<8x1xf32>
    %cst_8 = arith.constant 0.000000e+00 : f32
    %25 = vector.broadcast %cst_8 : f32 to vector<8x1xf32>
    %26 = arith.maximumf %24, %25 : vector<8x1xf32>
    %27 = arith.mulf %26, %26 : vector<8x1xf32>
    %28 = arith.mulf %27, %21 : vector<8x1xf32>
    %cst_9 = arith.constant 0.000000e+00 : f32
    %29 = vector.broadcast %cst_9 : f32 to vector<8x1xf32>
    %30 = arith.subf %29, %28 : vector<8x1xf32>
    %c0_10 = arith.constant 0 : index
    %c0_11 = arith.constant 0 : index
    %31 = vector.load %arg4[%c0_10, %c0_11] : memref<8x1xf32, #tpu.memory_space<vmem>>, vector<8x1xf32>
    %32 = arith.mulf %30, %31 : vector<8x1xf32>
    %c1_i32 = arith.constant 1 : i32
    %33 = arith.muli %arg0, %c1_i32 : i32
    %34 = arith.addi %33, %arg1 : i32
    %c8_i32 = arith.constant 8 : i32
    %35 = arith.muli %34, %c8_i32 : i32
    %36 = tpu.iota {dimensions = array<i32: 0>} : vector<8x1xi32>
    %37 = vector.broadcast %35 : i32 to vector<8x1xi32>
    %38 = arith.addi %37, %36 : vector<8x1xi32>
    %c8_i32_12 = arith.constant 8 : i32
    %39 = vector.broadcast %c8_i32_12 : i32 to vector<8x1xi32>
    %40 = arith.cmpi slt, %38, %39 : vector<8x1xi32>
    %c0_13 = arith.constant 0 : index
    %c0_14 = arith.constant 0 : index
    %c0_15 = arith.constant 0 : index
    %41 = vector.load %arg5[%c0_13, %c0_14, %c0_15] : memref<1x8x1xf32, #tpu.memory_space<vmem>>, vector<1x8x1xf32>
    %cst_16 = arith.constant 0.000000e+00 : f32
    %42 = vector.broadcast %cst_16 : f32 to vector<8x1xf32>
    %43 = arith.select %40, %32, %42 : vector<8x1xi1>, vector<8x1xf32>
    %44 = vector.shape_cast %43 : vector<8x1xf32> to vector<1x8x1xf32>
    %45 = arith.addf %41, %44 : vector<1x8x1xf32>
    %c0_17 = arith.constant 0 : index
    %c0_18 = arith.constant 0 : index
    %c0_19 = arith.constant 0 : index
    %46 = vector.load %arg5[%c0_17, %c0_18, %c0_19] : memref<1x8x1xf32, #tpu.memory_space<vmem>>, vector<1x8x1xf32>
    tpu.vector_store %arg5[%c0_17, %c0_18, %c0_19], %45 {strides = array<i32>} : memref<1x8x1xf32, #tpu.memory_space<vmem>>, vector<1x8x1xf32>,
    return
  }
  func.func @transform_0(%arg0: i32, %arg1: i32) -> (i32, i32) {
    %c1_i32 = arith.constant 1 : i32
    %0 = arith.muli %arg0, %c1_i32 : i32
    %1 = arith.addi %0, %arg1 : i32
    %c0_i32 = arith.constant 0 : i32
    %c0_i32_0 = arith.constant 0 : i32
    return %1, %c0_i32 : i32, i32
  }
  func.func @transform_1(%arg0: i32, %arg1: i32) -> (i32, i32) {
    %c1_i32 = arith.constant 1 : i32
    %0 = arith.muli %arg0, %c1_i32 : i32
    %1 = arith.addi %0, %arg1 : i32
    %c0_i32 = arith.constant 0 : i32
    %c0_i32_0 = arith.constant 0 : i32
    return %1, %c0_i32 : i32, i32
  }
  func.func @transform_2(%arg0: i32, %arg1: i32) -> (i32, i32) {
    %c1_i32 = arith.constant 1 : i32
    %0 = arith.muli %arg0, %c1_i32 : i32
    %1 = arith.addi %0, %arg1 : i32
    %c0_i32 = arith.constant 0 : i32
    %c0_i32_0 = arith.constant 0 : i32
    return %1, %c0_i32 : i32, i32
  }
  func.func @transform_3(%arg0: i32, %arg1: i32) -> (i32, i32, i32) {
    %c0_i32 = arith.constant 0 : i32
    %c0_i32_0 = arith.constant 0 : i32
    %c0_i32_1 = arith.constant 0 : i32
    return %arg0, %c0_i32, %c0_i32_0 : i32, i32, i32
  }
}

</mosaic_0001>

<llo_original>
// kernel: tpu_custom_call.1
$region0: #{tpu_custom_call.1}
  #allocation0 [shape = 'u32[]', space=smem, size = 0x4, offset = 0x4, fixed_abs, tag = 'smem constant byte address 0x4 - core index']
  #allocation1 [shape = 'u32[144,128]{1,0:T(1,128)}', space=vmem, size = 0x12000, scoped, tag = 'internal scratch']
  %s0 = inlined_call_operand.vmem [shape: f32[8,16], index: 0, kind: input, shape index: {}]
  %s1 = inlined_call_operand.vmem [shape: s32[8,1], index: 1, kind: input, shape index: {}]
  %s2 = inlined_call_operand.vmem [shape: f32[8,1], index: 2, kind: input, shape index: {}]
  %s3 = inlined_call_operand.vmem [shape: f32[1,8,1], index: 3, kind: output, shape index: {}]
  %s4 = sld [smem:[#allocation0]]
  $region26: #{tpu_custom_call.1} parent=0
    _
  %s6 = ssub.s32 1, %s4
  %s7 = scalar_select 0, %s6, %s4
  // Predicated region
  $region2: #{tpu_custom_call.1} parent=0 // pred_check
    _
  $region3: #{tpu_custom_call.1} parent=0 // pred_check_branch
    %9 = sbr.rel (0) target = $region5
  $region4: #{tpu_custom_call.1} parent=0 // pred_region
    %s10 = sadd.s32 0, 0
    %p11 = scmp.lt.s32.totalorder %s10, 0
    %s12 = scalar_select %p11, %s10, 0
    %s13 = smul.addr %s12, 8
    %s14 = scalar_lea.vmem %s0, %s13
    %s15 = sadd.s32 0, 0
  $region5: #{tpu_custom_call.1} parent=0 // pred_fallthru
    _
  // Predicated region
  $region6: #{tpu_custom_call.1} parent=0 // pred_check
    _
  $region7: #{tpu_custom_call.1} parent=0 // pred_check_branch
    %17 = sbr.rel (0) target = $region9
  $region8: #{tpu_custom_call.1} parent=0 // pred_region
    %s18 = sadd.s32 0, 0
    %p19 = scmp.lt.s32.totalorder %s18, 0
    %s20 = scalar_select %p19, %s18, 0
    %s21 = smul.addr %s20, 8
    %s22 = scalar_lea.vmem %s1, %s21
    %s23 = sadd.s32 0, 0
  $region9: #{tpu_custom_call.1} parent=0 // pred_fallthru
    _
  // Predicated region
  $region10: #{tpu_custom_call.1} parent=0 // pred_check
    _
  $region11: #{tpu_custom_call.1} parent=0 // pred_check_branch
    %25 = sbr.rel (0) target = $region13
  $region12: #{tpu_custom_call.1} parent=0 // pred_region
    %s26 = sadd.s32 0, 0
    %p27 = scmp.lt.s32.totalorder %s26, 0
    %s28 = scalar_select %p27, %s26, 0
    %s29 = smul.addr %s28, 8
    %s30 = scalar_lea.vmem %s2, %s29
    %s31 = sadd.s32 0, 0
  $region13: #{tpu_custom_call.1} parent=0 // pred_fallthru
    _
  %s32 = sadd.s32 0, 0
  %p33 = scmp.lt.s32.totalorder %s32, 0
  %s34 = scalar_select %p33, %s32, 0
  %s35 = smul.addr %s34, 8
  %s36 = scalar_lea.vmem %s0, %s35
  %s37 = sadd.s32 0, 0
  %p38 = scmp.lt.s32.totalorder %s37, 0
  %s39 = scalar_select %p38, %s37, 0
  %s40 = smul.addr %s39, 8
  %s41 = scalar_lea.vmem %s1, %s40
  %s42 = sadd.s32 0, 0
  %p43 = scmp.lt.s32.totalorder %s42, 0
  %s44 = scalar_select %p43, %s42, 0
  %s45 = smul.addr %s44, 8
  %s46 = scalar_lea.vmem %s2, %s45
  %s47 = sadd.s32 0, 0
  %p48 = scmp.lt.s32.totalorder %s47, 0
  %s49 = scalar_select %p48, %s47, 0
  %s50 = smul.addr %s49, 8
  %s51 = scalar_lea.vmem %s0, %s50
  %s52 = sadd.s32 0, 0
  %s53 = sadd.s32 0, 0
  %p54 = scmp.lt.s32.totalorder %s53, 0
  %s55 = scalar_select %p54, %s53, 0
  %s56 = smul.addr %s55, 8
  %s57 = scalar_lea.vmem %s1, %s56
  %s58 = sadd.s32 0, 0
  %s59 = sadd.s32 0, 0
  %p60 = scmp.lt.s32.totalorder %s59, 0
  %s61 = scalar_select %p60, %s59, 0
  %s62 = smul.addr %s61, 8
  %s63 = scalar_lea.vmem %s2, %s62
  %s64 = sadd.s32 0, 0
  %p65 = scmp.eq.s32.totalorder 0, 0
  // Predicated region
  $region14: #{tpu_custom_call.1} parent=0 // pred_check
    %p66 = pneg %p65
  $region15: #{tpu_custom_call.1} parent=0 // pred_check_branch
    %68 = sbr.rel (%p66) target = $region17
  $region16: #{tpu_custom_call.1} parent=0 // pred_region
    %vm69 = vcmask 7168
    %70 = vst.msk [vmem:[%s3] sm:$0xff] %vm69, 0.0
  $region17: #{tpu_custom_call.1} parent=0 // pred_fallthru
    _
  %v71 = vld [vmem:[%s51] sm:$0xff]
  %v72 = vld [vmem:[%s57] sm:$0xff]
  %vm73 = vcmask 130048
  %v74 = vsel %vm73, %v71, -inf
  %75 = vmax.xlane.f32.xlu0 %v74
  %v76 = vpop.xlane.xlu0 %75
  %v77 = vsub.f32 %v71, %v76
  %v78 = vmul.f32 %v77, 1.442695
  %v79 = vpow.pop %v78
  %v80 = vsel %vm73, %v79, 0.0
  %81 = vadd.xlane.f32.xlu0 %v80
  %v82 = vpop.xlane.xlu0 %81
  %v83 = vlog2.pop %v82
  %v84 = vmul.f32 %v83, 0.6931472
  %v85 = vlaneseq
  %v86 = vand.u32 %v85, 127
  %87 = vset.pattern.permute.xlu0 0
  %88 = vperm.xlu0 %87, %v72
  %v89 = vpop.permute.xlu0 %88
  %vm90 = vcmp.eq.s32.totalorder %v86, %v89
  %v91 = vsel %vm90, %v71, 0.0
  %v92 = vsel %vm73, %v91, 0.0
  %93 = vadd.xlane.f32.xlu0 %v92
  %v94 = vpop.xlane.xlu0 %93
  %v95 = vsub.f32 %v94, %v76
  %v96 = vsub.f32 %v95, %v84
  %v97 = vmul.f32 %v96, 1.442695
  %v98 = vpow.pop %v97
  %v99 = vsub.f32 1.0, %v98
  %v100 = vmax.f32 %v99, 0.0
  %v101 = vmul.f32 %v100, %v100
  %v102 = vmul.f32 %v101, %v96
  %v103 = vsub.f32 0.0, %v102
  %v104 = vld [vmem:[%s63] sm:$0xff]
  %v105 = vmul.f32 %v103, %v104
  %s106 = sadd.s32 0, 0
  %s107 = smul.u32 %s106, 8
  %v108 = vlaneseq
  %v109 = vshrl.u32 %v108, 7
  %v110 = vstv %s107
  %v111 = vadd.s32 %v110, %v109
  %vm112 = vcmp.lt.s32.totalorder %v111, 8
  %v113 = vld [vmem:[%s3] sm:$0xff]
  %v114 = vsel %vm112, %v105, 0.0
  %v115 = vadd.f32 %v113, %v114
  %vm116 = vcmask 7168
  %117 = vst.msk [vmem:[%s3] sm:$0xff] %vm116, %v115
  // Predicated region
  $region18: #{tpu_custom_call.1} parent=0 // pred_check
    _
  $region19: #{tpu_custom_call.1} parent=0 // pred_check_branch
    %119 = sbr.rel (0) target = $region21
  $region20: #{tpu_custom_call.1} parent=0 // pred_region
    _
  $region21: #{tpu_custom_call.1} parent=0 // pred_fallthru
    _
  // Predicated region
  $region22: #{tpu_custom_call.1} parent=0 // pred_check
    _
  $region23: #{tpu_custom_call.1} parent=0 // pred_check_branch
    %121 = sbr.rel (0) target = $region25
  $region24: #{tpu_custom_call.1} parent=0 // pred_region
    _
  $region25: #{tpu_custom_call.1} parent=0 // pred_fallthru
    _

</llo_original>
